<compile_context>
chip_gen: v7x
topology: tpu7x:2x2x1
jax: 0.10.0
libtpu: 0.0.40
codegen_flags: <defaults>
</compile_context>

<pallas_src>
import functools

import jax
import jax.numpy as jnp
from jax import lax
from jax.experimental import pallas as pl
from jax.experimental.pallas import tpu as pltpu

# In-kernel stateful sampling availability (falls back to host noise if absent).
_USE_INKERNEL_PRNG = [hasattr(pltpu, "stateful_normal") and hasattr(pltpu, "prng_seed")]


def _policy_math(x, w1, b1, wh, bh, noise, out_ref, out_size):
    """Shared math: hidden layer + fused heads + reparameterized sample."""
    h = jnp.dot(x, w1, precision=lax.Precision.HIGHEST,
                preferred_element_type=jnp.float32) + b1
    h = jnp.maximum(h, 0.0)

    heads = jnp.dot(h, wh, precision=lax.Precision.HIGHEST,
                    preferred_element_type=jnp.float32) + bh
    mean = jnp.tanh(heads[:, :out_size]) * 2.0
    std = 1.0 + jnp.exp(heads[:, out_size:])   # exp(softplus(s)) == 1 + exp(s)
    action = mean + std * noise

    # Static lane-slice stores into the packed [action | mean | std] slab
    # (no concatenate / lane-repack work).
    out_ref[:, :out_size] = action
    out_ref[:, out_size:2 * out_size] = mean
    out_ref[:, 2 * out_size:] = std


def _policy_kernel_prng(seed_ref, x_ref, w1_ref, b1_ref, wh_ref, bh_ref, out_ref,
                        *, out_size):
    # Distinct, order-independent PRNG stream per grid step.
    pltpu.prng_seed(seed_ref[0] + pl.program_id(0))
    noise = pltpu.stateful_normal((x_ref.shape[0], out_size), jnp.float32)
    _policy_math(x_ref[...], w1_ref[...], b1_ref[...], wh_ref[...], bh_ref[...],
                 noise, out_ref, out_size)


def _policy_kernel_noise(x_ref, w1_ref, b1_ref, wh_ref, bh_ref, noise_ref, out_ref,
                         *, out_size):
    _policy_math(x_ref[...], w1_ref[...], b1_ref[...], wh_ref[...], bh_ref[...],
                 noise_ref[...], out_ref, out_size)


def _choose_tile(batch, tile_b):
    """Batch tile: as large as requested, but keep >= 2 grid steps when the
    batch allows it (so v7x's two TensorCores both get work); multiple of 8."""
    tb = min(tile_b, max(8, -(-batch // 2)))
    return max(8, ((tb + 7) // 8) * 8)


def policy_network_forward(x, params, *, noise=None, seed=0, tile_b=4096):
    """Full Policy_Network forward pass inside a single Pallas kernel.

    Args:
      x:      (B, input_size) float32 observations.
      params: dict with
                w1      (input_size, 128),    b1      (1, 128),
                w_heads (128, 2*Out)=[Wm|Ws], b_heads (1, 2*Out)=[bm|bs].
      noise:  optional (B, Out) standard-normal draws.  If None, noise is
              generated in-kernel from `seed` (saves one HBM input stream).
      seed:   int32 seed for in-kernel sampling.
      tile_b: batch tile; ~2048 (v5e) / 4096 (v6e) / 8192 (v7x) recommended.
              VMEM stays at a few MiB even at tb=8192 with input_size=32.
    Returns:
      (action, mean, std), each (B, Out) float32.
    """
    B, in_size = x.shape
    hidden = params["w1"].shape[1]
    out_size = params["w_heads"].shape[1] // 2

    tb = _choose_tile(B, tile_b)
    grid = (pl.cdiv(B, tb),)
    out_shape = jax.ShapeDtypeStruct((B, 3 * out_size), jnp.float32)
    compiler_params = pltpu.CompilerParams(dimension_semantics=("parallel",))

    packed = None
    if noise is None and _USE_INKERNEL_PRNG[0]:
        grid_spec = pltpu.PrefetchScalarGridSpec(
            num_scalar_prefetch=1,          # seed lands in SMEM
            grid=grid,
            in_specs=[
                pl.BlockSpec((tb, in_size), lambda i, s: (i, 0)),            # x
                pl.BlockSpec((in_size, hidden), lambda i, s: (0, 0)),        # w1 (resident)
                pl.BlockSpec((1, hidden), lambda i, s: (0, 0)),              # b1 (resident)
                pl.BlockSpec((hidden, 2 * out_size), lambda i, s: (0, 0)),   # fused heads W
                pl.BlockSpec((1, 2 * out_size), lambda i, s: (0, 0)),        # fused heads b
            ],
            out_specs=pl.BlockSpec((tb, 3 * out_size), lambda i, s: (i, 0)),
        )
        try:
            packed = pl.pallas_call(
                functools.partial(_policy_kernel_prng, out_size=out_size),
                out_shape=out_shape,
                grid_spec=grid_spec,
                compiler_params=compiler_params,
            )(jnp.asarray([seed], dtype=jnp.int32),
              x, params["w1"], params["b1"], params["w_heads"], params["b_heads"])
        except Exception:
            # TODO(synk): stateful in-kernel sampling not lowerable on this
            # JAX/TPU combination; fall back to host-generated noise below.
            _USE_INKERNEL_PRNG[0] = False
            packed = None

    if packed is None:
        if noise is None:
            noise = jax.random.normal(jax.random.PRNGKey(seed), (B, out_size),
                                      jnp.float32)
        grid_spec = pltpu.PrefetchScalarGridSpec(
            num_scalar_prefetch=0,
            grid=grid,
            in_specs=[
                pl.BlockSpec((tb, in_size), lambda i: (i, 0)),               # x
                pl.BlockSpec((in_size, hidden), lambda i: (0, 0)),           # w1 (resident)
                pl.BlockSpec((1, hidden), lambda i: (0, 0)),                 # b1 (resident)
                pl.BlockSpec((hidden, 2 * out_size), lambda i: (0, 0)),      # fused heads W
                pl.BlockSpec((1, 2 * out_size), lambda i: (0, 0)),           # fused heads b
                pl.BlockSpec((tb, out_size), lambda i: (i, 0)),              # noise
            ],
            out_specs=pl.BlockSpec((tb, 3 * out_size), lambda i: (i, 0)),
        )
        packed = pl.pallas_call(
            functools.partial(_policy_kernel_noise, out_size=out_size),
            out_shape=out_shape,
            grid_spec=grid_spec,
            compiler_params=compiler_params,
        )(x, params["w1"], params["b1"], params["w_heads"], params["b_heads"], noise)

    action = packed[:, :out_size]
    mean = packed[:, out_size:2 * out_size]
    std = packed[:, 2 * out_size:]
    return action, mean, std


def init_params(key, input_size, hidden, output_size):
    """Parameter init mirroring the PyTorch module.

    Hidden layer: torch default uniform(-1/sqrt(fan_in), 1/sqrt(fan_in)).
    mean/std heads: uniform_init(value=0.003), concatenated into one fused
    (hidden, 2*out) weight / (1, 2*out) bias (weights stored as (in, out)).
    """
    k1, k2, k3, k4, k5, k6 = jax.random.split(key, 6)
    bound1 = 1.0 / jnp.sqrt(jnp.float32(input_size))
    w1 = jax.random.uniform(k1, (input_size, hidden), jnp.float32, -bound1, bound1)
    b1 = jax.random.uniform(k2, (1, hidden), jnp.float32, -bound1, bound1)
    v = 0.003
    wm = jax.random.uniform(k3, (hidden, output_size), jnp.float32, -v, v)
    bm = jax.random.uniform(k4, (1, output_size), jnp.float32, -v, v)
    ws = jax.random.uniform(k5, (hidden, output_size), jnp.float32, -v, v)
    bs = jax.random.uniform(k6, (1, output_size), jnp.float32, -v, v)
    return {
        "w1": w1,
        "b1": b1,
        "w_heads": jnp.concatenate([wm, ws], axis=1),   # (hidden, 2*out)
        "b_heads": jnp.concatenate([bm, bs], axis=1),   # (1, 2*out)
    }


def _reference(x, params, noise):
    """Pure-JAX reference with the original (softplus/exp) formulation."""
    out = params["w_heads"].shape[1] // 2
    h = jnp.maximum(x @ params["w1"] + params["b1"], 0.0)
    heads = h @ params["w_heads"] + params["b_heads"]
    mean = jnp.tanh(heads[:, :out]) * 2.0
    std = jnp.exp(jax.nn.softplus(heads[:, out:]))
    action = mean + std * noise
    return action, mean, std


if __name__ == "__main__":
    key = jax.random.PRNGKey(0)
    k_param, k_x, k_noise, k_x2, k_n2 = jax.random.split(key, 5)

    input_size = 32
    hidden = 128          # fixed by the module (nn.Linear(input_size, 128))
    output_size = 4
    params = init_params(k_param, input_size, hidden, output_size)

    # --- Case 1: external noise -> full numerical check incl. the sample. ---
    batch = 8
    x = jax.random.normal(k_x, (batch, input_size), jnp.float32)
    noise = jax.random.normal(k_noise, (batch, output_size), jnp.float32)
    action, mean, std = policy_network_forward(x, params, noise=noise)
    jax.block_until_ready((action, mean, std))
    a_ref, m_ref, s_ref = _reference(x, params, noise)
    assert jnp.allclose(mean, m_ref, atol=1e-5)
    assert jnp.allclose(std, s_ref, atol=1e-5)
    assert jnp.allclose(action, a_ref, atol=1e-5)

    # --- Case 2: non-divisible batch, no wrapper pad (edge-block path). ---
    batch2 = 20
    x2 = jax.random.normal(k_x2, (batch2, input_size), jnp.float32)
    noise2 = jax.random.normal(k_n2, (batch2, output_size), jnp.float32)
    action2, mean2, std2 = policy_network_forward(x2, params, noise=noise2, tile_b=8)
    jax.block_until_ready((action2, mean2, std2))
    a2_ref, m2_ref, s2_ref = _reference(x2, params, noise2)
    assert jnp.allclose(mean2, m2_ref, atol=1e-5)
    assert jnp.allclose(std2, s2_ref, atol=1e-5)
    assert jnp.allclose(action2, a2_ref, atol=1e-5)

    # --- Case 3: in-kernel PRNG sampling (mean/std exact; action finite). ---
    action3, mean3, std3 = policy_network_forward(x, params, seed=123)
    jax.block_until_ready((action3, mean3, std3))
    assert jnp.allclose(mean3, m_ref, atol=1e-5)
    assert jnp.allclose(std3, s_ref, atol=1e-5)
    assert bool(jnp.all(jnp.isfinite(action3)))

    print("KERNEL_OK")
</pallas_src>

<mosaic_0001>
module attributes {stable_mosaic.version = 11 : i64} {
  func.func @_policy_kernel_noise(%arg0: i32, %arg1: memref<8x32xf32, #tpu.memory_space<vmem>>, %arg2: memref<32x128xf32, #tpu.memory_space<vmem>>, %arg3: memref<1x128xf32, #tpu.memory_space<vmem>>, %arg4: memref<128x8xf32, #tpu.memory_space<vmem>>, %arg5: memref<1x8xf32, #tpu.memory_space<vmem>>, %arg6: memref<8x4xf32, #tpu.memory_space<vmem>>, %arg7: memref<8x12xf32, #tpu.memory_space<vmem>>) attributes {dimension_semantics = [#tpu.dimension_semantics<parallel>], iteration_bounds = array<i64: 1>, scalar_prefetch = 0 : i64, scratch_operands = 0 : i64, tpu.core_type = #tpu.core_type<tc>, window_params = [{transform_indices = @transform_0, window_bounds = array<i64: 8, 32>}, {pipeline_mode = #tpu.pipeline_mode<synchronous>, transform_indices = @transform_1, window_bounds = array<i64: 32, 128>}, {pipeline_mode = #tpu.pipeline_mode<synchronous>, transform_indices = @transform_2, window_bounds = array<i64: 1, 128>}, {pipeline_mode = #tpu.pipeline_mode<synchronous>, transform_indices = @transform_3, window_bounds = array<i64: 128, 8>}, {pipeline_mode = #tpu.pipeline_mode<synchronous>, transform_indices = @transform_4, window_bounds = array<i64: 1, 8>}, {transform_indices = @transform_5, window_bounds = array<i64: 8, 4>}, {transform_indices = @transform_6, window_bounds = array<i64: 8, 12>}]} {
    %c0 = arith.constant 0 : index
    %c0_0 = arith.constant 0 : index
    %0 = vector.load %arg1[%c0, %c0_0] : memref<8x32xf32, #tpu.memory_space<vmem>>, vector<8x32xf32>
    %c0_1 = arith.constant 0 : index
    %c0_2 = arith.constant 0 : index
    %1 = vector.load %arg2[%c0_1, %c0_2] : memref<32x128xf32, #tpu.memory_space<vmem>>, vector<32x128xf32>
    %c0_3 = arith.constant 0 : index
    %c0_4 = arith.constant 0 : index
    %2 = vector.load %arg3[%c0_3, %c0_4] : memref<1x128xf32, #tpu.memory_space<vmem>>, vector<1x128xf32>
    %c0_5 = arith.constant 0 : index
    %c0_6 = arith.constant 0 : index
    %3 = vector.load %arg4[%c0_5, %c0_6] : memref<128x8xf32, #tpu.memory_space<vmem>>, vector<128x8xf32>
    %c0_7 = arith.constant 0 : index
    %c0_8 = arith.constant 0 : index
    %4 = vector.load %arg5[%c0_7, %c0_8] : memref<1x8xf32, #tpu.memory_space<vmem>>, vector<1x8xf32>
    %c0_9 = arith.constant 0 : index
    %c0_10 = arith.constant 0 : index
    %5 = vector.load %arg6[%c0_9, %c0_10] : memref<8x4xf32, #tpu.memory_space<vmem>>, vector<8x4xf32>
    %cst = arith.constant dense<0.000000e+00> : vector<8x128xf32>
    %6 = tpu.matmul %0, %1, %cst {dimension_numbers = #tpu.dot_dimension_numbers<[1], [0], [0], [1], [0, 0, 1, 1], [], []>, precision = #tpu.contract_precision<fp32>} : vector<8x32xf32>, vector<32x128xf32>, vector<8x128xf32> -> vector<8x128xf32>
    %7 = vector.broadcast %2 : vector<1x128xf32> to vector<8x128xf32>
    %8 = arith.addf %6, %7 : vector<8x128xf32>
    %cst_11 = arith.constant 0.000000e+00 : f32
    %9 = vector.broadcast %cst_11 : f32 to vector<8x128xf32>
    %10 = arith.maximumf %8, %9 : vector<8x128xf32>
    %cst_12 = arith.constant dense<0.000000e+00> : vector<8x8xf32>
    %11 = tpu.matmul %10, %3, %cst_12 {dimension_numbers = #tpu.dot_dimension_numbers<[1], [0], [0], [1], [0, 0, 1, 1], [], []>, precision = #tpu.contract_precision<fp32>} : vector<8x128xf32>, vector<128x8xf32>, vector<8x8xf32> -> vector<8x8xf32>
    %12 = vector.broadcast %4 : vector<1x8xf32> to vector<8x8xf32>
    %13 = arith.addf %11, %12 : vector<8x8xf32>
    %14 = vector.extract_strided_slice %13 {offsets = [0, 0], sizes = [8, 4], strides = [1, 1]} : vector<8x8xf32> to vector<8x4xf32>
    %15 = math.tanh %14 : vector<8x4xf32>
    %cst_13 = arith.constant 2.000000e+00 : f32
    %16 = vector.broadcast %cst_13 : f32 to vector<8x4xf32>
    %17 = arith.mulf %15, %16 : vector<8x4xf32>
    %18 = vector.extract_strided_slice %13 {offsets = [0, 4], sizes = [8, 4], strides = [1, 1]} : vector<8x8xf32> to vector<8x4xf32>
    %19 = math.exp %18 : vector<8x4xf32>
    %cst_14 = arith.constant 1.000000e+00 : f32
    %20 = vector.broadcast %cst_14 : f32 to vector<8x4xf32>
    %21 = arith.addf %20, %19 : vector<8x4xf32>
    %22 = arith.mulf %21, %5 : vector<8x4xf32>
    %23 = arith.addf %17, %22 : vector<8x4xf32>
    %c0_15 = arith.constant 0 : index
    %c0_16 = arith.constant 0 : index
    %24 = vector.load %arg7[%c0_15, %c0_16] : memref<8x12xf32, #tpu.memory_space<vmem>>, vector<8x4xf32>
    tpu.vector_store %arg7[%c0_15, %c0_16], %23 {strides = array<i32>} : memref<8x12xf32, #tpu.memory_space<vmem>>, vector<8x4xf32>,
    %c0_17 = arith.constant 0 : index
    %c4 = arith.constant 4 : index
    %25 = vector.load %arg7[%c0_17, %c4] : memref<8x12xf32, #tpu.memory_space<vmem>>, vector<8x4xf32>
    tpu.vector_store %arg7[%c0_17, %c4], %17 {strides = array<i32>} : memref<8x12xf32, #tpu.memory_space<vmem>>, vector<8x4xf32>,
    %c0_18 = arith.constant 0 : index
    %c8 = arith.constant 8 : index
    %26 = vector.load %arg7[%c0_18, %c8] : memref<8x12xf32, #tpu.memory_space<vmem>>, vector<8x4xf32>
    tpu.vector_store %arg7[%c0_18, %c8], %21 {strides = array<i32>} : memref<8x12xf32, #tpu.memory_space<vmem>>, vector<8x4xf32>,
    return
  }
  func.func @transform_0(%arg0: i32) -> (i32, i32) {
    %c0_i32 = arith.constant 0 : i32
    %c0_i32_0 = arith.constant 0 : i32
    return %arg0, %c0_i32 : i32, i32
  }
  func.func @transform_1(%arg0: i32) -> (i32, i32) {
    %c0_i32 = arith.constant 0 : i32
    %c0_i32_0 = arith.constant 0 : i32
    %c0_i32_1 = arith.constant 0 : i32
    return %c0_i32, %c0_i32_0 : i32, i32
  }
  func.func @transform_2(%arg0: i32) -> (i32, i32) {
    %c0_i32 = arith.constant 0 : i32
    %c0_i32_0 = arith.constant 0 : i32
    %c0_i32_1 = arith.constant 0 : i32
    return %c0_i32, %c0_i32_0 : i32, i32
  }
  func.func @transform_3(%arg0: i32) -> (i32, i32) {
    %c0_i32 = arith.constant 0 : i32
    %c0_i32_0 = arith.constant 0 : i32
    %c0_i32_1 = arith.constant 0 : i32
    return %c0_i32, %c0_i32_0 : i32, i32
  }
  func.func @transform_4(%arg0: i32) -> (i32, i32) {
    %c0_i32 = arith.constant 0 : i32
    %c0_i32_0 = arith.constant 0 : i32
    %c0_i32_1 = arith.constant 0 : i32
    return %c0_i32, %c0_i32_0 : i32, i32
  }
  func.func @transform_5(%arg0: i32) -> (i32, i32) {
    %c0_i32 = arith.constant 0 : i32
    %c0_i32_0 = arith.constant 0 : i32
    return %arg0, %c0_i32 : i32, i32
  }
  func.func @transform_6(%arg0: i32) -> (i32, i32) {
    %c0_i32 = arith.constant 0 : i32
    %c0_i32_0 = arith.constant 0 : i32
    return %arg0, %c0_i32 : i32, i32
  }
}

</mosaic_0001>

<llo_original>
// kernel: tpu_custom_call.1
$region0: #{tpu_custom_call.1}
  #allocation0 [shape = 'u32[]', space=smem, size = 0x4, offset = 0x4, fixed_abs, tag = 'smem constant byte address 0x4 - core index']
  #allocation1 [shape = 'u32[144,128]{1,0:T(1,128)}', space=vmem, size = 0x12000, scoped, tag = 'internal scratch']
  %s0 = inlined_call_operand.vmem [shape: f32[8,32], index: 0, kind: input, shape index: {}]
  %s1 = inlined_call_operand.vmem [shape: f32[32,128], index: 1, kind: input, shape index: {}]
  %s2 = inlined_call_operand.vmem [shape: f32[1,128], index: 2, kind: input, shape index: {}]
  %s3 = inlined_call_operand.vmem [shape: f32[128,8], index: 3, kind: input, shape index: {}]
  %s4 = inlined_call_operand.vmem [shape: f32[1,8], index: 4, kind: input, shape index: {}]
  %s5 = inlined_call_operand.vmem [shape: f32[8,4], index: 5, kind: input, shape index: {}]
  %s6 = inlined_call_operand.hbm [shape: f32[8,12], index: 6, kind: output, shape index: {}]
  %s7 = sld [smem:[#allocation0]]
  $region34: #{tpu_custom_call.1} parent=0
    _
  %s9 = ssub.s32 1, %s7
  %s10 = scalar_select 0, %s9, %s7
  $region1: #{tpu_custom_call.1} parent=0
    #allocation2 [shape = 'u8[4096]{0}', space=vmem, size = 0x1000, scoped, tag = 'output window, operand 0, single buffered']
    #allocation3 [shape = 's32[1]{0}', space=sflag, size = 0x4, scoped, tag = 'scoped memory for tpu_custom_call.1']
    %11 = vsyncpa [#allocation3], 0
    // Predicated region
    $region2: #{tpu_custom_call.1} parent=1 // pred_check
      _
    $region3: #{tpu_custom_call.1} parent=1 // pred_check_branch
      %13 = sbr.rel (0) target = $region5
    $region4: #{tpu_custom_call.1} parent=1 // pred_region
      _
    $region5: #{tpu_custom_call.1} parent=1 // pred_fallthru
      _
    // Predicated region
    $region6: #{tpu_custom_call.1} parent=1 // pred_check
      _
    $region7: #{tpu_custom_call.1} parent=1 // pred_check_branch
      %15 = sbr.rel (0) target = $region9
    $region8: #{tpu_custom_call.1} parent=1 // pred_region
      _
    $region9: #{tpu_custom_call.1} parent=1 // pred_fallthru
      _
    // Predicated region
    $region10: #{tpu_custom_call.1} parent=1 // pred_check
      _
    $region11: #{tpu_custom_call.1} parent=1 // pred_check_branch
      %17 = sbr.rel (0) target = $region13
    $region12: #{tpu_custom_call.1} parent=1 // pred_region
      _
    $region13: #{tpu_custom_call.1} parent=1 // pred_fallthru
      _
    // Predicated region
    $region14: #{tpu_custom_call.1} parent=1 // pred_check
      _
    $region15: #{tpu_custom_call.1} parent=1 // pred_check_branch
      %19 = sbr.rel (0) target = $region17
    $region16: #{tpu_custom_call.1} parent=1 // pred_region
      _
    $region17: #{tpu_custom_call.1} parent=1 // pred_fallthru
      _
    // Predicated region
    $region18: #{tpu_custom_call.1} parent=1 // pred_check
      _
    $region19: #{tpu_custom_call.1} parent=1 // pred_check_branch
      %21 = sbr.rel (0) target = $region21
    $region20: #{tpu_custom_call.1} parent=1 // pred_region
      _
    $region21: #{tpu_custom_call.1} parent=1 // pred_fallthru
      _
    // Predicated region
    $region22: #{tpu_custom_call.1} parent=1 // pred_check
      _
    $region23: #{tpu_custom_call.1} parent=1 // pred_check_branch
      %23 = sbr.rel (0) target = $region25
    $region24: #{tpu_custom_call.1} parent=1 // pred_region
      _
    $region25: #{tpu_custom_call.1} parent=1 // pred_fallthru
      _
    %v24 = vld [vmem:[%s0] sm:$0xff]
    %v25 = vld [vmem:[%s1] sm:$0xff]
    %v26 = vld [vmem:[%s1 + $0x8] sm:$0xff]
    %v27 = vld [vmem:[%s1 + $0x10] sm:$0xff]
    %v28 = vld [vmem:[%s1 + $0x18] sm:$0xff]
    %v29 = vld [vmem:[%s2] sm:$0x1]
    %v30 = vld [vmem:[%s3] sm:$0xff]
    %v31 = vld [vmem:[%s3 + $0x8] sm:$0xff]
    %v32 = vld [vmem:[%s3 + $0x10] sm:$0xff]
    %v33 = vld [vmem:[%s3 + $0x18] sm:$0xff]
    %v34 = vld [vmem:[%s3 + $0x20] sm:$0xff]
    %v35 = vld [vmem:[%s3 + $0x28] sm:$0xff]
    %v36 = vld [vmem:[%s3 + $0x30] sm:$0xff]
    %v37 = vld [vmem:[%s3 + $0x38] sm:$0xff]
    %v38 = vld [vmem:[%s3 + $0x40] sm:$0xff]
    %v39 = vld [vmem:[%s3 + $0x48] sm:$0xff]
    %v40 = vld [vmem:[%s3 + $0x50] sm:$0xff]
    %v41 = vld [vmem:[%s3 + $0x58] sm:$0xff]
    %v42 = vld [vmem:[%s3 + $0x60] sm:$0xff]
    %v43 = vld [vmem:[%s3 + $0x68] sm:$0xff]
    %v44 = vld [vmem:[%s3 + $0x70] sm:$0xff]
    %v45 = vld [vmem:[%s3 + $0x78] sm:$0xff]
    %v46 = vld [vmem:[%s4] sm:$0x1]
    %v47 = vld [vmem:[%s5] sm:$0xff]
    %v49 = vlaneseq
    %v50 = vshrl.u32 %v49, 7
    %v51 = vsub.s32 0, %v50
    %v52 = vrot.slane %v29, %v51
    %vm54 = vcmask 261120
    %v56 = vsel %vm54, %v24, 0
    %58 = vmatprep.subr.mxu0 0.0
    %v59 = vand.u32 %v25, 4294901760
    %60 = vmatpush1.msra.mxu0 %v59
    %61 = vmatprep.subr.mxu0 0.0
    %v62 = vand.u32 %v26, 4294901760
    %63 = vmatpush1.msra.mxu0 %v62
    %64 = vmatprep.subr.mxu0 0.0
    %v65 = vand.u32 %v27, 4294901760
    %66 = vmatpush1.msra.mxu0 %v65
    %67 = vmatprep.subr.mxu0 0.0
    %v68 = vand.u32 %v28, 4294901760
    %69 = vmatpush1.msra.mxu0 %v68
    %70 = vmatprep.subr.mxu0 0.0
    %71 = vmatpush1.msra.mxu0 0.0
    %72 = vmatprep.subr.mxu0 0.0
    %73 = vmatpush1.msra.mxu0 0.0
    %74 = vmatprep.subr.mxu0 0.0
    %75 = vmatpush1.msra.mxu0 0.0
    %76 = vmatprep.subr.mxu0 0.0
    %77 = vmatpush1.msra.mxu0 0.0
    %78 = vmatprep.subr.mxu0 0.0
    %79 = vmatpush1.msra.mxu0 0.0
    %80 = vmatprep.subr.mxu0 0.0
    %81 = vmatpush1.msra.mxu0 0.0
    %82 = vmatprep.subr.mxu0 0.0
    %83 = vmatpush1.msra.mxu0 0.0
    %84 = vmatprep.subr.mxu0 0.0
    %85 = vmatpush1.msra.mxu0 0.0
    %86 = vmatprep.subr.mxu0 0.0
    %87 = vmatpush1.msra.mxu0 0.0
    %88 = vmatprep.subr.mxu0 0.0
    %89 = vmatpush1.msra.mxu0 0.0
    %90 = vmatprep.subr.mxu0 0.0
    %91 = vmatpush1.msra.mxu0 0.0
    %92 = vmatprep.subr.mxu0 0.0
    %93 = vmatpush1.msra.mxu0 0.0
    %94 = vmatprep.subr.mxu0 0.0
    %95 = vmatpush1.msra.mxu0 0.0
    %96 = vmatprep.subr.mxu0 0.0
    %97 = vmatpush1.msra.mxu0 0.0
    %98 = vmatprep.subr.mxu0 0.0
    %99 = vmatpush1.msra.mxu0 0.0
    %100 = vmatprep.subr.mxu0 0.0
    %101 = vmatpush1.msra.mxu0 0.0
    %102 = vmatprep.subr.mxu0 0.0
    %103 = vmatpush1.msra.mxu0 0.0
    %104 = vmatprep.subr.mxu0 0.0
    %105 = vmatpush1.msra.mxu0 0.0
    %106 = vmatprep.subr.mxu0 0.0
    %107 = vmatpush1.msra.mxu0 0.0
    %108 = vmatprep.subr.mxu0 0.0
    %109 = vmatpush1.msra.mxu0 0.0
    %110 = vmatprep.subr.mxu0 0.0
    %111 = vmatpush1.msra.mxu0 0.0
    %112 = vmatprep.subr.mxu0 0.0
    %113 = vmatpush1.msra.mxu0 0.0
    %114 = vmatprep.subr.mxu0 0.0
    %115 = vmatpush1.msra.mxu0 0.0
    %116 = vmatprep.subr.mxu0 0.0
    %117 = vmatpush1.msra.mxu0 0.0
    %118 = vmatprep.subr.mxu0 0.0
    %119 = vmatpush1.msra.mxu0 0.0
    %120 = vmatprep.subr.mxu0 0.0
    %121 = vmatpush1.msra.mxu0 0.0
    %122 = vmatprep.subr.mxu0 0.0
    %123 = vmatpush1.msra.mxu0 0.0
    %124 = vmatprep.subr.mxu0 0.0
    %125 = vmatpush1.msra.mxu0 0.0
    %126 = vmatprep.mubr.f32.mxu0 0.0
    %v127 = vand.u32 %v56, 4294901760
    %v128 = vsub.f32 %v56, %v127
    %v129 = vand.u32 %v128, 4294901760
    %v130 = vsub.f32 %v128, %v129
    %v131 = vand.u32 %v130, 4294901760
    %132 = vmatmul.mubr.f32.gmra.mrb[0].mxu0 %v131
    %v133 = vpop.f32.mrb[0].mxu0
    %v134 = vadd.f32 %v52, %v133
    %v135 = vpop.f32.mrb[0].mxu0
    %136 = vdwg.mxu0
    %137 = vmatprep.subr.mxu0 0.0
    %v138 = vand.u32 %v25, 4294901760
    %v139 = vsub.f32 %v25, %v138
    %v140 = vand.u32 %v139, 4294901760
    %v141 = vsub.f32 %v139, %v140
    %v142 = vand.u32 %v141, 4294901760
    %143 = vmatpush1.msra.mxu0 %v142
    %144 = vmatprep.subr.mxu0 0.0
    %v145 = vand.u32 %v26, 4294901760
    %v146 = vsub.f32 %v26, %v145
    %v147 = vand.u32 %v146, 4294901760
    %v148 = vsub.f32 %v146, %v147
    %v149 = vand.u32 %v148, 4294901760
    %150 = vmatpush1.msra.mxu0 %v149
    %151 = vmatprep.subr.mxu0 0.0
    %v152 = vand.u32 %v27, 4294901760
    %v153 = vsub.f32 %v27, %v152
    %v154 = vand.u32 %v153, 4294901760
    %v155 = vsub.f32 %v153, %v154
    %v156 = vand.u32 %v155, 4294901760
    %157 = vmatpush1.msra.mxu0 %v156
    %158 = vmatprep.subr.mxu0 0.0
    %v159 = vand.u32 %v28, 4294901760
    %v160 = vsub.f32 %v28, %v159
    %v161 = vand.u32 %v160, 4294901760
    %v162 = vsub.f32 %v160, %v161
    %v163 = vand.u32 %v162, 4294901760
    %164 = vmatpush1.msra.mxu0 %v163
    %165 = vmatprep.subr.mxu0 0.0
    %166 = vmatpush1.msra.mxu0 0.0
    %167 = vmatprep.subr.mxu0 0.0
    %168 = vmatpush1.msra.mxu0 0.0
    %169 = vmatprep.subr.mxu0 0.0
    %170 = vmatpush1.msra.mxu0 0.0
    %171 = vmatprep.subr.mxu0 0.0
    %172 = vmatpush1.msra.mxu0 0.0
    %173 = vmatprep.subr.mxu0 0.0
    %174 = vmatpush1.msra.mxu0 0.0
    %175 = vmatprep.subr.mxu0 0.0
    %176 = vmatpush1.msra.mxu0 0.0
    %177 = vmatprep.subr.mxu0 0.0
    %178 = vmatpush1.msra.mxu0 0.0
    %179 = vmatprep.subr.mxu0 0.0
    %180 = vmatpush1.msra.mxu0 0.0
    %181 = vmatprep.subr.mxu0 0.0
    %182 = vmatpush1.msra.mxu0 0.0
    %183 = vmatprep.subr.mxu0 0.0
    %184 = vmatpush1.msra.mxu0 0.0
    %185 = vmatprep.subr.mxu0 0.0
    %186 = vmatpush1.msra.mxu0 0.0
    %187 = vmatprep.subr.mxu0 0.0
    %188 = vmatpush1.msra.mxu0 0.0
    %189 = vmatprep.subr.mxu0 0.0
    %190 = vmatpush1.msra.mxu0 0.0
    %191 = vmatprep.subr.mxu0 0.0
    %192 = vmatpush1.msra.mxu0 0.0
    %193 = vmatprep.subr.mxu0 0.0
    %194 = vmatpush1.msra.mxu0 0.0
    %195 = vmatprep.subr.mxu0 0.0
    %196 = vmatpush1.msra.mxu0 0.0
    %197 = vmatprep.subr.mxu0 0.0
    %198 = vmatpush1.msra.mxu0 0.0
    %199 = vmatprep.subr.mxu0 0.0
    %200 = vmatpush1.msra.mxu0 0.0
    %201 = vmatprep.subr.mxu0 0.0
    %202 = vmatpush1.msra.mxu0 0.0
    %203 = vmatprep.subr.mxu0 0.0
    %204 = vmatpush1.msra.mxu0 0.0
    %205 = vmatprep.subr.mxu0 0.0
    %206 = vmatpush1.msra.mxu0 0.0
    %207 = vmatprep.subr.mxu0 0.0
    %208 = vmatpush1.msra.mxu0 0.0
    %209 = vmatprep.subr.mxu0 0.0
    %210 = vmatpush1.msra.mxu0 0.0
    %211 = vmatprep.subr.mxu0 0.0
    %212 = vmatpush1.msra.mxu0 0.0
    %213 = vmatprep.subr.mxu0 0.0
    %214 = vmatpush1.msra.mxu0 0.0
    %215 = vmatprep.subr.mxu0 0.0
    %216 = vmatpush1.msra.mxu0 0.0
    %217 = vmatprep.subr.mxu0 0.0
    %218 = vmatpush1.msra.mxu0 0.0
    %219 = vmatprep.subr.mxu0 0.0
    %220 = vmatpush1.msra.mxu0 0.0
    %221 = vmatprep.mubr.f32.mxu0 0.0
    %v222 = vand.u32 %v56, 4294901760
    %223 = vmatmul.mubr.f32.gmra.mrb[0].mxu0 %v222
    %v224 = vpop.f32.mrb[0].mxu0
    %v225 = vadd.f32 %v134, %v224
    %v226 = vpop.f32.mrb[0].mxu0
    %227 = vdwg.mxu0
    %228 = vmatprep.subr.mxu0 0.0
    %v229 = vand.u32 %v25, 4294901760
    %v230 = vsub.f32 %v25, %v229
    %231 = vmatpush1.msra.mxu0 %v230
    %232 = vmatprep.subr.mxu0 0.0
    %v233 = vand.u32 %v26, 4294901760
    %v234 = vsub.f32 %v26, %v233
    %235 = vmatpush1.msra.mxu0 %v234
    %236 = vmatprep.subr.mxu0 0.0
    %v237 = vand.u32 %v27, 4294901760
    %v238 = vsub.f32 %v27, %v237
    %239 = vmatpush1.msra.mxu0 %v238
    %240 = vmatprep.subr.mxu0 0.0
    %v241 = vand.u32 %v28, 4294901760
    %v242 = vsub.f32 %v28, %v241
    %243 = vmatpush1.msra.mxu0 %v242
    %244 = vmatprep.subr.mxu0 0.0
    %245 = vmatpush1.msra.mxu0 0.0
    %246 = vmatprep.subr.mxu0 0.0
    %247 = vmatpush1.msra.mxu0 0.0
    %248 = vmatprep.subr.mxu0 0.0
    %249 = vmatpush1.msra.mxu0 0.0
    %250 = vmatprep.subr.mxu0 0.0
    %251 = vmatpush1.msra.mxu0 0.0
    %252 = vmatprep.subr.mxu0 0.0
    %253 = vmatpush1.msra.mxu0 0.0
    %254 = vmatprep.subr.mxu0 0.0
    %255 = vmatpush1.msra.mxu0 0.0
    %256 = vmatprep.subr.mxu0 0.0
    %257 = vmatpush1.msra.mxu0 0.0
    %258 = vmatprep.subr.mxu0 0.0
    %259 = vmatpush1.msra.mxu0 0.0
    %260 = vmatprep.subr.mxu0 0.0
    %261 = vmatpush1.msra.mxu0 0.0
    %262 = vmatprep.subr.mxu0 0.0
    %263 = vmatpush1.msra.mxu0 0.0
    %264 = vmatprep.subr.mxu0 0.0
    %265 = vmatpush1.msra.mxu0 0.0
    %266 = vmatprep.subr.mxu0 0.0
    %267 = vmatpush1.msra.mxu0 0.0
    %268 = vmatprep.subr.mxu0 0.0
    %269 = vmatpush1.msra.mxu0 0.0
    %270 = vmatprep.subr.mxu0 0.0
    %271 = vmatpush1.msra.mxu0 0.0
    %272 = vmatprep.subr.mxu0 0.0
    %273 = vmatpush1.msra.mxu0 0.0
    %274 = vmatprep.subr.mxu0 0.0
    %275 = vmatpush1.msra.mxu0 0.0
    %276 = vmatprep.subr.mxu0 0.0
    %277 = vmatpush1.msra.mxu0 0.0
    %278 = vmatprep.subr.mxu0 0.0
    %279 = vmatpush1.msra.mxu0 0.0
    %280 = vmatprep.subr.mxu0 0.0
    %281 = vmatpush1.msra.mxu0 0.0
    %282 = vmatprep.subr.mxu0 0.0
    %283 = vmatpush1.msra.mxu0 0.0
    %284 = vmatprep.subr.mxu0 0.0
    %285 = vmatpush1.msra.mxu0 0.0
    %286 = vmatprep.subr.mxu0 0.0
    %287 = vmatpush1.msra.mxu0 0.0
    %288 = vmatprep.subr.mxu0 0.0
    %289 = vmatpush1.msra.mxu0 0.0
    %290 = vmatprep.subr.mxu0 0.0
    %291 = vmatpush1.msra.mxu0 0.0
    %292 = vmatprep.subr.mxu0 0.0
    %293 = vmatpush1.msra.mxu0 0.0
    %294 = vmatprep.subr.mxu0 0.0
    %295 = vmatpush1.msra.mxu0 0.0
    %296 = vmatprep.subr.mxu0 0.0
    %297 = vmatpush1.msra.mxu0 0.0
    %298 = vmatprep.subr.mxu0 0.0
    %299 = vmatpush1.msra.mxu0 0.0
    %300 = vmatprep.mubr.f32.mxu0 0.0
    %v301 = vand.u32 %v56, 4294901760
    %v302 = vsub.f32 %v56, %v301
    %303 = vmatmul.mubr.f32.gmra.mrb[0].mxu0 %v302
    %v304 = vpop.f32.mrb[0].mxu0
    %v305 = vadd.f32 %v225, %v304
    %v306 = vpop.f32.mrb[0].mxu0
    %307 = vdwg.mxu0
    %308 = vmatprep.subr.mxu0 0.0
    %v309 = vand.u32 %v25, 4294901760
    %310 = vmatpush1.msra.mxu0 %v309
    %311 = vmatprep.subr.mxu0 0.0
    %v312 = vand.u32 %v26, 4294901760
    %313 = vmatpush1.msra.mxu0 %v312
    %314 = vmatprep.subr.mxu0 0.0
    %v315 = vand.u32 %v27, 4294901760
    %316 = vmatpush1.msra.mxu0 %v315
    %317 = vmatprep.subr.mxu0 0.0
    %v318 = vand.u32 %v28, 4294901760
    %319 = vmatpush1.msra.mxu0 %v318
    %320 = vmatprep.subr.mxu0 0.0
    %321 = vmatpush1.msra.mxu0 0.0
    %322 = vmatprep.subr.mxu0 0.0
    %323 = vmatpush1.msra.mxu0 0.0
    %324 = vmatprep.subr.mxu0 0.0
    %325 = vmatpush1.msra.mxu0 0.0
    %326 = vmatprep.subr.mxu0 0.0
    %327 = vmatpush1.msra.mxu0 0.0
    %328 = vmatprep.subr.mxu0 0.0
    %329 = vmatpush1.msra.mxu0 0.0
    %330 = vmatprep.subr.mxu0 0.0
    %331 = vmatpush1.msra.mxu0 0.0
    %332 = vmatprep.subr.mxu0 0.0
    %333 = vmatpush1.msra.mxu0 0.0
    %334 = vmatprep.subr.mxu0 0.0
    %335 = vmatpush1.msra.mxu0 0.0
    %336 = vmatprep.subr.mxu0 0.0
    %337 = vmatpush1.msra.mxu0 0.0
    %338 = vmatprep.subr.mxu0 0.0
    %339 = vmatpush1.msra.mxu0 0.0
    %340 = vmatprep.subr.mxu0 0.0
    %341 = vmatpush1.msra.mxu0 0.0
    %342 = vmatprep.subr.mxu0 0.0
    %343 = vmatpush1.msra.mxu0 0.0
    %344 = vmatprep.subr.mxu0 0.0
    %345 = vmatpush1.msra.mxu0 0.0
    %346 = vmatprep.subr.mxu0 0.0
    %347 = vmatpush1.msra.mxu0 0.0
    %348 = vmatprep.subr.mxu0 0.0
    %349 = vmatpush1.msra.mxu0 0.0
    %350 = vmatprep.subr.mxu0 0.0
    %351 = vmatpush1.msra.mxu0 0.0
    %352 = vmatprep.subr.mxu0 0.0
    %353 = vmatpush1.msra.mxu0 0.0
    %354 = vmatprep.subr.mxu0 0.0
    %355 = vmatpush1.msra.mxu0 0.0
    %356 = vmatprep.subr.mxu0 0.0
    %357 = vmatpush1.msra.mxu0 0.0
    %358 = vmatprep.subr.mxu0 0.0
    %359 = vmatpush1.msra.mxu0 0.0
    %360 = vmatprep.subr.mxu0 0.0
    %361 = vmatpush1.msra.mxu0 0.0
    %362 = vmatprep.subr.mxu0 0.0
    %363 = vmatpush1.msra.mxu0 0.0
    %364 = vmatprep.subr.mxu0 0.0
    %365 = vmatpush1.msra.mxu0 0.0
    %366 = vmatprep.subr.mxu0 0.0
    %367 = vmatpush1.msra.mxu0 0.0
    %368 = vmatprep.subr.mxu0 0.0
    %369 = vmatpush1.msra.mxu0 0.0
    %370 = vmatprep.subr.mxu0 0.0
    %371 = vmatpush1.msra.mxu0 0.0
    %372 = vmatprep.subr.mxu0 0.0
    %373 = vmatpush1.msra.mxu0 0.0
    %374 = vmatprep.subr.mxu0 0.0
    %375 = vmatpush1.msra.mxu0 0.0
    %376 = vmatprep.mubr.f32.mxu0 0.0
    %v377 = vand.u32 %v56, 4294901760
    %v378 = vsub.f32 %v56, %v377
    %v379 = vand.u32 %v378, 4294901760
    %380 = vmatmul.mubr.f32.gmra.mrb[0].mxu0 %v379
    %v381 = vpop.f32.mrb[0].mxu0
    %v382 = vadd.f32 %v305, %v381
    %v383 = vpop.f32.mrb[0].mxu0
    %384 = vdwg.mxu0
    %385 = vmatprep.subr.mxu0 0.0
    %v386 = vand.u32 %v25, 4294901760
    %v387 = vsub.f32 %v25, %v386
    %v388 = vand.u32 %v387, 4294901760
    %389 = vmatpush1.msra.mxu0 %v388
    %390 = vmatprep.subr.mxu0 0.0
    %v391 = vand.u32 %v26, 4294901760
    %v392 = vsub.f32 %v26, %v391
    %v393 = vand.u32 %v392, 4294901760
    %394 = vmatpush1.msra.mxu0 %v393
    %395 = vmatprep.subr.mxu0 0.0
    %v396 = vand.u32 %v27, 4294901760
    %v397 = vsub.f32 %v27, %v396
    %v398 = vand.u32 %v397, 4294901760
    %399 = vmatpush1.msra.mxu0 %v398
    %400 = vmatprep.subr.mxu0 0.0
    %v401 = vand.u32 %v28, 4294901760
    %v402 = vsub.f32 %v28, %v401
    %v403 = vand.u32 %v402, 4294901760
    %404 = vmatpush1.msra.mxu0 %v403
    %405 = vmatprep.subr.mxu0 0.0
    %406 = vmatpush1.msra.mxu0 0.0
    %407 = vmatprep.subr.mxu0 0.0
    %408 = vmatpush1.msra.mxu0 0.0
    %409 = vmatprep.subr.mxu0 0.0
    %410 = vmatpush1.msra.mxu0 0.0
    %411 = vmatprep.subr.mxu0 0.0
    %412 = vmatpush1.msra.mxu0 0.0
    %413 = vmatprep.subr.mxu0 0.0
    %414 = vmatpush1.msra.mxu0 0.0
    %415 = vmatprep.subr.mxu0 0.0
    %416 = vmatpush1.msra.mxu0 0.0
    %417 = vmatprep.subr.mxu0 0.0
    %418 = vmatpush1.msra.mxu0 0.0
    %419 = vmatprep.subr.mxu0 0.0
    %420 = vmatpush1.msra.mxu0 0.0
    %421 = vmatprep.subr.mxu0 0.0
    %422 = vmatpush1.msra.mxu0 0.0
    %423 = vmatprep.subr.mxu0 0.0
    %424 = vmatpush1.msra.mxu0 0.0
    %425 = vmatprep.subr.mxu0 0.0
    %426 = vmatpush1.msra.mxu0 0.0
    %427 = vmatprep.subr.mxu0 0.0
    %428 = vmatpush1.msra.mxu0 0.0
    %429 = vmatprep.subr.mxu0 0.0
    %430 = vmatpush1.msra.mxu0 0.0
    %431 = vmatprep.subr.mxu0 0.0
    %432 = vmatpush1.msra.mxu0 0.0
    %433 = vmatprep.subr.mxu0 0.0
    %434 = vmatpush1.msra.mxu0 0.0
    %435 = vmatprep.subr.mxu0 0.0
    %436 = vmatpush1.msra.mxu0 0.0
    %437 = vmatprep.subr.mxu0 0.0
    %438 = vmatpush1.msra.mxu0 0.0
    %439 = vmatprep.subr.mxu0 0.0
    %440 = vmatpush1.msra.mxu0 0.0
    %441 = vmatprep.subr.mxu0 0.0
    %442 = vmatpush1.msra.mxu0 0.0
    %443 = vmatprep.subr.mxu0 0.0
    %444 = vmatpush1.msra.mxu0 0.0
    %445 = vmatprep.subr.mxu0 0.0
    %446 = vmatpush1.msra.mxu0 0.0
    %447 = vmatprep.subr.mxu0 0.0
    %448 = vmatpush1.msra.mxu0 0.0
    %449 = vmatprep.subr.mxu0 0.0
    %450 = vmatpush1.msra.mxu0 0.0
    %451 = vmatprep.subr.mxu0 0.0
    %452 = vmatpush1.msra.mxu0 0.0
    %453 = vmatprep.subr.mxu0 0.0
    %454 = vmatpush1.msra.mxu0 0.0
    %455 = vmatprep.subr.mxu0 0.0
    %456 = vmatpush1.msra.mxu0 0.0
    %457 = vmatprep.subr.mxu0 0.0
    %458 = vmatpush1.msra.mxu0 0.0
    %459 = vmatprep.subr.mxu0 0.0
    %460 = vmatpush1.msra.mxu0 0.0
    %461 = vmatprep.mubr.f32.mxu0 0.0
    %v462 = vand.u32 %v56, 4294901760
    %463 = vmatmul.mubr.f32.gmra.mrb[0].mxu0 %v462
    %v464 = vpop.f32.mrb[0].mxu0
    %v465 = vadd.f32 %v382, %v464
    %v466 = vpop.f32.mrb[0].mxu0
    %467 = vdwg.mxu0
    %468 = vmatprep.subr.mxu0 0.0
    %v469 = vand.u32 %v25, 4294901760
    %470 = vmatpush1.msra.mxu0 %v469
    %471 = vmatprep.subr.mxu0 0.0
    %v472 = vand.u32 %v26, 4294901760
    %473 = vmatpush1.msra.mxu0 %v472
    %474 = vmatprep.subr.mxu0 0.0
    %v475 = vand.u32 %v27, 4294901760
    %476 = vmatpush1.msra.mxu0 %v475
    %477 = vmatprep.subr.mxu0 0.0
    %v478 = vand.u32 %v28, 4294901760
    %479 = vmatpush1.msra.mxu0 %v478
    %480 = vmatprep.subr.mxu0 0.0
    %481 = vmatpush1.msra.mxu0 0.0
    %482 = vmatprep.subr.mxu0 0.0
    %483 = vmatpush1.msra.mxu0 0.0
    %484 = vmatprep.subr.mxu0 0.0
    %485 = vmatpush1.msra.mxu0 0.0
    %486 = vmatprep.subr.mxu0 0.0
    %487 = vmatpush1.msra.mxu0 0.0
    %488 = vmatprep.subr.mxu0 0.0
    %489 = vmatpush1.msra.mxu0 0.0
    %490 = vmatprep.subr.mxu0 0.0
    %491 = vmatpush1.msra.mxu0 0.0
    %492 = vmatprep.subr.mxu0 0.0
    %493 = vmatpush1.msra.mxu0 0.0
    %494 = vmatprep.subr.mxu0 0.0
    %495 = vmatpush1.msra.mxu0 0.0
    %496 = vmatprep.subr.mxu0 0.0
    %497 = vmatpush1.msra.mxu0 0.0
    %498 = vmatprep.subr.mxu0 0.0
    %499 = vmatpush1.msra.mxu0 0.0
    %500 = vmatprep.subr.mxu0 0.0
    %501 = vmatpush1.msra.mxu0 0.0
    %502 = vmatprep.subr.mxu0 0.0
    %503 = vmatpush1.msra.mxu0 0.0
    %504 = vmatprep.subr.mxu0 0.0
    %505 = vmatpush1.msra.mxu0 0.0
    %506 = vmatprep.subr.mxu0 0.0
    %507 = vmatpush1.msra.mxu0 0.0
    %508 = vmatprep.subr.mxu0 0.0
    %509 = vmatpush1.msra.mxu0 0.0
    %510 = vmatprep.subr.mxu0 0.0
    %511 = vmatpush1.msra.mxu0 0.0
    %512 = vmatprep.subr.mxu0 0.0
    %513 = vmatpush1.msra.mxu0 0.0
    %514 = vmatprep.subr.mxu0 0.0
    %515 = vmatpush1.msra.mxu0 0.0
    %516 = vmatprep.subr.mxu0 0.0
    %517 = vmatpush1.msra.mxu0 0.0
    %518 = vmatprep.subr.mxu0 0.0
    %519 = vmatpush1.msra.mxu0 0.0
    %520 = vmatprep.subr.mxu0 0.0
    %521 = vmatpush1.msra.mxu0 0.0
    %522 = vmatprep.subr.mxu0 0.0
    %523 = vmatpush1.msra.mxu0 0.0
    %524 = vmatprep.subr.mxu0 0.0
    %525 = vmatpush1.msra.mxu0 0.0
    %526 = vmatprep.subr.mxu0 0.0
    %527 = vmatpush1.msra.mxu0 0.0
    %528 = vmatprep.subr.mxu0 0.0
    %529 = vmatpush1.msra.mxu0 0.0
    %530 = vmatprep.subr.mxu0 0.0
    %531 = vmatpush1.msra.mxu0 0.0
    %532 = vmatprep.subr.mxu0 0.0
    %533 = vmatpush1.msra.mxu0 0.0
    %534 = vmatprep.subr.mxu0 0.0
    %535 = vmatpush1.msra.mxu0 0.0
    %536 = vmatprep.mubr.f32.mxu0 0.0
    %v537 = vand.u32 %v56, 4294901760
    %538 = vmatmul.mubr.f32.gmra.mrb[0].mxu0 %v537
    %v539 = vpop.f32.mrb[0].mxu0
    %v540 = vadd.f32 %v465, %v539
    %v541 = vpop.f32.mrb[0].mxu0
    %542 = vdwg.mxu0
    %v543 = vmax.f32 %v540, 0.0
    %v545 = vlaneseq
    %v546 = vshrl.u32 %v545, 7
    %v547 = vsub.s32 0, %v546
    %v548 = vrot.slane %v46, %v547
    %550 = vmatprep.subr.mxu0 0.0
    %v551 = vand.u32 %v30, 4294901760
    %552 = vmatpush1.msra.mxu0 %v551
    %553 = vmatprep.subr.mxu0 0.0
    %v554 = vand.u32 %v31, 4294901760
    %555 = vmatpush1.msra.mxu0 %v554
    %556 = vmatprep.subr.mxu0 0.0
    %v557 = vand.u32 %v32, 4294901760
    %558 = vmatpush1.msra.mxu0 %v557
    %559 = vmatprep.subr.mxu0 0.0
    %v560 = vand.u32 %v33, 4294901760
    %561 = vmatpush1.msra.mxu0 %v560
    %562 = vmatprep.subr.mxu0 0.0
    %v563 = vand.u32 %v34, 4294901760
    %564 = vmatpush1.msra.mxu0 %v563
    %565 = vmatprep.subr.mxu0 0.0
    %v566 = vand.u32 %v35, 4294901760
    %567 = vmatpush1.msra.mxu0 %v566
    %568 = vmatprep.subr.mxu0 0.0
    %v569 = vand.u32 %v36, 4294901760
    %570 = vmatpush1.msra.mxu0 %v569
    %571 = vmatprep.subr.mxu0 0.0
    %v572 = vand.u32 %v37, 4294901760
    %573 = vmatpush1.msra.mxu0 %v572
    %574 = vmatprep.subr.mxu0 0.0
    %v575 = vand.u32 %v38, 4294901760
    %576 = vmatpush1.msra.mxu0 %v575
    %577 = vmatprep.subr.mxu0 0.0
    %v578 = vand.u32 %v39, 4294901760
    %579 = vmatpush1.msra.mxu0 %v578
    %580 = vmatprep.subr.mxu0 0.0
    %v581 = vand.u32 %v40, 4294901760
    %582 = vmatpush1.msra.mxu0 %v581
    %583 = vmatprep.subr.mxu0 0.0
    %v584 = vand.u32 %v41, 4294901760
    %585 = vmatpush1.msra.mxu0 %v584
    %586 = vmatprep.subr.mxu0 0.0
    %v587 = vand.u32 %v42, 4294901760
    %588 = vmatpush1.msra.mxu0 %v587
    %589 = vmatprep.subr.mxu0 0.0
    %v590 = vand.u32 %v43, 4294901760
    %591 = vmatpush1.msra.mxu0 %v590
    %592 = vmatprep.subr.mxu0 0.0
    %v593 = vand.u32 %v44, 4294901760
    %594 = vmatpush1.msra.mxu0 %v593
    %595 = vmatprep.subr.mxu0 0.0
    %v596 = vand.u32 %v45, 4294901760
    %597 = vmatpush1.msra.mxu0 %v596
    %598 = vmatprep.subr.mxu0 0.0
    %599 = vmatpush1.msra.mxu0 0.0
    %600 = vmatprep.subr.mxu0 0.0
    %601 = vmatpush1.msra.mxu0 0.0
    %602 = vmatprep.subr.mxu0 0.0
    %603 = vmatpush1.msra.mxu0 0.0
    %604 = vmatprep.subr.mxu0 0.0
    %605 = vmatpush1.msra.mxu0 0.0
    %606 = vmatprep.subr.mxu0 0.0
    %607 = vmatpush1.msra.mxu0 0.0
    %608 = vmatprep.subr.mxu0 0.0
    %609 = vmatpush1.msra.mxu0 0.0
    %610 = vmatprep.subr.mxu0 0.0
    %611 = vmatpush1.msra.mxu0 0.0
    %612 = vmatprep.subr.mxu0 0.0
    %613 = vmatpush1.msra.mxu0 0.0
    %614 = vmatprep.subr.mxu0 0.0
    %615 = vmatpush1.msra.mxu0 0.0
    %616 = vmatprep.subr.mxu0 0.0
    %617 = vmatpush1.msra.mxu0 0.0
    %618 = vmatprep.subr.mxu0 0.0
    %619 = vmatpush1.msra.mxu0 0.0
    %620 = vmatprep.subr.mxu0 0.0
    %621 = vmatpush1.msra.mxu0 0.0
    %622 = vmatprep.subr.mxu0 0.0
    %623 = vmatpush1.msra.mxu0 0.0
    %624 = vmatprep.subr.mxu0 0.0
    %625 = vmatpush1.msra.mxu0 0.0
    %626 = vmatprep.subr.mxu0 0.0
    %627 = vmatpush1.msra.mxu0 0.0
    %628 = vmatprep.subr.mxu0 0.0
    %629 = vmatpush1.msra.mxu0 0.0
    %630 = vmatprep.mubr.f32.mxu0 0.0
    %v631 = vand.u32 %v543, 4294901760
    %v632 = vsub.f32 %v543, %v631
    %v633 = vand.u32 %v632, 4294901760
    %v634 = vsub.f32 %v632, %v633
    %v635 = vand.u32 %v634, 4294901760
    %636 = vmatmul.mubr.f32.gmra.mrb[0].mxu0 %v635
    %v637 = vpop.f32.mrb[0].mxu0
    %v638 = vadd.f32 %v548, %v637
    %v639 = vpop.f32.mrb[0].mxu0
    %640 = vdwg.mxu0
    %641 = vmatprep.subr.mxu0 0.0
    %v642 = vand.u32 %v30, 4294901760
    %v643 = vsub.f32 %v30, %v642
    %v644 = vand.u32 %v643, 4294901760
    %v645 = vsub.f32 %v643, %v644
    %v646 = vand.u32 %v645, 4294901760
    %647 = vmatpush1.msra.mxu0 %v646
    %648 = vmatprep.subr.mxu0 0.0
    %v649 = vand.u32 %v31, 4294901760
    %v650 = vsub.f32 %v31, %v649
    %v651 = vand.u32 %v650, 4294901760
    %v652 = vsub.f32 %v650, %v651
    %v653 = vand.u32 %v652, 4294901760
    %654 = vmatpush1.msra.mxu0 %v653
    %655 = vmatprep.subr.mxu0 0.0
    %v656 = vand.u32 %v32, 4294901760
    %v657 = vsub.f32 %v32, %v656
    %v658 = vand.u32 %v657, 4294901760
    %v659 = vsub.f32 %v657, %v658
    %v660 = vand.u32 %v659, 4294901760
    %661 = vmatpush1.msra.mxu0 %v660
    %662 = vmatprep.subr.mxu0 0.0
    %v663 = vand.u32 %v33, 4294901760
    %v664 = vsub.f32 %v33, %v663
    %v665 = vand.u32 %v664, 4294901760
    %v666 = vsub.f32 %v664, %v665
    %v667 = vand.u32 %v666, 4294901760
    %668 = vmatpush1.msra.mxu0 %v667
    %669 = vmatprep.subr.mxu0 0.0
    %v670 = vand.u32 %v34, 4294901760
    %v671 = vsub.f32 %v34, %v670
    %v672 = vand.u32 %v671, 4294901760
    %v673 = vsub.f32 %v671, %v672
    %v674 = vand.u32 %v673, 4294901760
    %675 = vmatpush1.msra.mxu0 %v674
    %676 = vmatprep.subr.mxu0 0.0
    %v677 = vand.u32 %v35, 4294901760
    %v678 = vsub.f32 %v35, %v677
    %v679 = vand.u32 %v678, 4294901760
    %v680 = vsub.f32 %v678, %v679
    %v681 = vand.u32 %v680, 4294901760
    %682 = vmatpush1.msra.mxu0 %v681
    %683 = vmatprep.subr.mxu0 0.0
    %v684 = vand.u32 %v36, 4294901760
    %v685 = vsub.f32 %v36, %v684
    %v686 = vand.u32 %v685, 4294901760
    %v687 = vsub.f32 %v685, %v686
    %v688 = vand.u32 %v687, 4294901760
    %689 = vmatpush1.msra.mxu0 %v688
    %690 = vmatprep.subr.mxu0 0.0
    %v691 = vand.u32 %v37, 4294901760
    %v692 = vsub.f32 %v37, %v691
    %v693 = vand.u32 %v692, 4294901760
    %v694 = vsub.f32 %v692, %v693
    %v695 = vand.u32 %v694, 4294901760
    %696 = vmatpush1.msra.mxu0 %v695
    %697 = vmatprep.subr.mxu0 0.0
    %v698 = vand.u32 %v38, 4294901760
    %v699 = vsub.f32 %v38, %v698
    %v700 = vand.u32 %v699, 4294901760
    %v701 = vsub.f32 %v699, %v700
    %v702 = vand.u32 %v701, 4294901760
    %703 = vmatpush1.msra.mxu0 %v702
    %704 = vmatprep.subr.mxu0 0.0
    %v705 = vand.u32 %v39, 4294901760
    %v706 = vsub.f32 %v39, %v705
    %v707 = vand.u32 %v706, 4294901760
    %v708 = vsub.f32 %v706, %v707
    %v709 = vand.u32 %v708, 4294901760
    %710 = vmatpush1.msra.mxu0 %v709
    %711 = vmatprep.subr.mxu0 0.0
    %v712 = vand.u32 %v40, 4294901760
    %v713 = vsub.f32 %v40, %v712
    %v714 = vand.u32 %v713, 4294901760
    %v715 = vsub.f32 %v713, %v714
    %v716 = vand.u32 %v715, 4294901760
    %717 = vmatpush1.msra.mxu0 %v716
    %718 = vmatprep.subr.mxu0 0.0
    %v719 = vand.u32 %v41, 4294901760
    %v720 = vsub.f32 %v41, %v719
    %v721 = vand.u32 %v720, 4294901760
    %v722 = vsub.f32 %v720, %v721
    %v723 = vand.u32 %v722, 4294901760
    %724 = vmatpush1.msra.mxu0 %v723
    %725 = vmatprep.subr.mxu0 0.0
    %v726 = vand.u32 %v42, 4294901760
    %v727 = vsub.f32 %v42, %v726
    %v728 = vand.u32 %v727, 4294901760
    %v729 = vsub.f32 %v727, %v728
    %v730 = vand.u32 %v729, 4294901760
    %731 = vmatpush1.msra.mxu0 %v730
    %732 = vmatprep.subr.mxu0 0.0
    %v733 = vand.u32 %v43, 4294901760
    %v734 = vsub.f32 %v43, %v733
    %v735 = vand.u32 %v734, 4294901760
    %v736 = vsub.f32 %v734, %v735
    %v737 = vand.u32 %v736, 4294901760
    %738 = vmatpush1.msra.mxu0 %v737
    %739 = vmatprep.subr.mxu0 0.0
    %v740 = vand.u32 %v44, 4294901760
    %v741 = vsub.f32 %v44, %v740
    %v742 = vand.u32 %v741, 4294901760
    %v743 = vsub.f32 %v741, %v742
    %v744 = vand.u32 %v743, 4294901760
    %745 = vmatpush1.msra.mxu0 %v744
    %746 = vmatprep.subr.mxu0 0.0
    %v747 = vand.u32 %v45, 4294901760
    %v748 = vsub.f32 %v45, %v747
    %v749 = vand.u32 %v748, 4294901760
    %v750 = vsub.f32 %v748, %v749
    %v751 = vand.u32 %v750, 4294901760
    %752 = vmatpush1.msra.mxu0 %v751
    %753 = vmatprep.subr.mxu0 0.0
    %754 = vmatpush1.msra.mxu0 0.0
    %755 = vmatprep.subr.mxu0 0.0
    %756 = vmatpush1.msra.mxu0 0.0
    %757 = vmatprep.subr.mxu0 0.0
    %758 = vmatpush1.msra.mxu0 0.0
    %759 = vmatprep.subr.mxu0 0.0
    %760 = vmatpush1.msra.mxu0 0.0
    %761 = vmatprep.subr.mxu0 0.0
    %762 = vmatpush1.msra.mxu0 0.0
    %763 = vmatprep.subr.mxu0 0.0
    %764 = vmatpush1.msra.mxu0 0.0
    %765 = vmatprep.subr.mxu0 0.0
    %766 = vmatpush1.msra.mxu0 0.0
    %767 = vmatprep.subr.mxu0 0.0
    %768 = vmatpush1.msra.mxu0 0.0
    %769 = vmatprep.subr.mxu0 0.0
    %770 = vmatpush1.msra.mxu0 0.0
    %771 = vmatprep.subr.mxu0 0.0
    %772 = vmatpush1.msra.mxu0 0.0
    %773 = vmatprep.subr.mxu0 0.0
    %774 = vmatpush1.msra.mxu0 0.0
    %775 = vmatprep.subr.mxu0 0.0
    %776 = vmatpush1.msra.mxu0 0.0
    %777 = vmatprep.subr.mxu0 0.0
    %778 = vmatpush1.msra.mxu0 0.0
    %779 = vmatprep.subr.mxu0 0.0
    %780 = vmatpush1.msra.mxu0 0.0
    %781 = vmatprep.subr.mxu0 0.0
    %782 = vmatpush1.msra.mxu0 0.0
    %783 = vmatprep.subr.mxu0 0.0
    %784 = vmatpush1.msra.mxu0 0.0
    %785 = vmatprep.mubr.f32.mxu0 0.0
    %v786 = vand.u32 %v543, 4294901760
    %787 = vmatmul.mubr.f32.gmra.mrb[0].mxu0 %v786
    %v788 = vpop.f32.mrb[0].mxu0
    %v789 = vadd.f32 %v638, %v788
    %v790 = vpop.f32.mrb[0].mxu0
    %791 = vdwg.mxu0
    %792 = vmatprep.subr.mxu0 0.0
    %v793 = vand.u32 %v30, 4294901760
    %v794 = vsub.f32 %v30, %v793
    %795 = vmatpush1.msra.mxu0 %v794
    %796 = vmatprep.subr.mxu0 0.0
    %v797 = vand.u32 %v31, 4294901760
    %v798 = vsub.f32 %v31, %v797
    %799 = vmatpush1.msra.mxu0 %v798
    %800 = vmatprep.subr.mxu0 0.0
    %v801 = vand.u32 %v32, 4294901760
    %v802 = vsub.f32 %v32, %v801
    %803 = vmatpush1.msra.mxu0 %v802
    %804 = vmatprep.subr.mxu0 0.0
    %v805 = vand.u32 %v33, 4294901760
    %v806 = vsub.f32 %v33, %v805
    %807 = vmatpush1.msra.mxu0 %v806
    %808 = vmatprep.subr.mxu0 0.0
    %v809 = vand.u32 %v34, 4294901760
    %v810 = vsub.f32 %v34, %v809
    %811 = vmatpush1.msra.mxu0 %v810
    %812 = vmatprep.subr.mxu0 0.0
    %v813 = vand.u32 %v35, 4294901760
    %v814 = vsub.f32 %v35, %v813
    %815 = vmatpush1.msra.mxu0 %v814
    %816 = vmatprep.subr.mxu0 0.0
    %v817 = vand.u32 %v36, 4294901760
    %v818 = vsub.f32 %v36, %v817
    %819 = vmatpush1.msra.mxu0 %v818
    %820 = vmatprep.subr.mxu0 0.0
    %v821 = vand.u32 %v37, 4294901760
    %v822 = vsub.f32 %v37, %v821
    %823 = vmatpush1.msra.mxu0 %v822
    %824 = vmatprep.subr.mxu0 0.0
    %v825 = vand.u32 %v38, 4294901760
    %v826 = vsub.f32 %v38, %v825
    %827 = vmatpush1.msra.mxu0 %v826
    %828 = vmatprep.subr.mxu0 0.0
    %v829 = vand.u32 %v39, 4294901760
    %v830 = vsub.f32 %v39, %v829
    %831 = vmatpush1.msra.mxu0 %v830
    %832 = vmatprep.subr.mxu0 0.0
    %v833 = vand.u32 %v40, 4294901760
    %v834 = vsub.f32 %v40, %v833
    %835 = vmatpush1.msra.mxu0 %v834
    %836 = vmatprep.subr.mxu0 0.0
    %v837 = vand.u32 %v41, 4294901760
    %v838 = vsub.f32 %v41, %v837
    %839 = vmatpush1.msra.mxu0 %v838
    %840 = vmatprep.subr.mxu0 0.0
    %v841 = vand.u32 %v42, 4294901760
    %v842 = vsub.f32 %v42, %v841
    %843 = vmatpush1.msra.mxu0 %v842
    %844 = vmatprep.subr.mxu0 0.0
    %v845 = vand.u32 %v43, 4294901760
    %v846 = vsub.f32 %v43, %v845
    %847 = vmatpush1.msra.mxu0 %v846
    %848 = vmatprep.subr.mxu0 0.0
    %v849 = vand.u32 %v44, 4294901760
    %v850 = vsub.f32 %v44, %v849
    %851 = vmatpush1.msra.mxu0 %v850
    %852 = vmatprep.subr.mxu0 0.0
    %v853 = vand.u32 %v45, 4294901760
    %v854 = vsub.f32 %v45, %v853
    %855 = vmatpush1.msra.mxu0 %v854
    %856 = vmatprep.subr.mxu0 0.0
    %857 = vmatpush1.msra.mxu0 0.0
    %858 = vmatprep.subr.mxu0 0.0
    %859 = vmatpush1.msra.mxu0 0.0
    %860 = vmatprep.subr.mxu0 0.0
    %861 = vmatpush1.msra.mxu0 0.0
    %862 = vmatprep.subr.mxu0 0.0
    %863 = vmatpush1.msra.mxu0 0.0
    %864 = vmatprep.subr.mxu0 0.0
    %865 = vmatpush1.msra.mxu0 0.0
    %866 = vmatprep.subr.mxu0 0.0
    %867 = vmatpush1.msra.mxu0 0.0
    %868 = vmatprep.subr.mxu0 0.0
    %869 = vmatpush1.msra.mxu0 0.0
    %870 = vmatprep.subr.mxu0 0.0
    %871 = vmatpush1.msra.mxu0 0.0
    %872 = vmatprep.subr.mxu0 0.0
    %873 = vmatpush1.msra.mxu0 0.0
    %874 = vmatprep.subr.mxu0 0.0
    %875 = vmatpush1.msra.mxu0 0.0
    %876 = vmatprep.subr.mxu0 0.0
    %877 = vmatpush1.msra.mxu0 0.0
    %878 = vmatprep.subr.mxu0 0.0
    %879 = vmatpush1.msra.mxu0 0.0
    %880 = vmatprep.subr.mxu0 0.0
    %881 = vmatpush1.msra.mxu0 0.0
    %882 = vmatprep.subr.mxu0 0.0
    %883 = vmatpush1.msra.mxu0 0.0
    %884 = vmatprep.subr.mxu0 0.0
    %885 = vmatpush1.msra.mxu0 0.0
    %886 = vmatprep.subr.mxu0 0.0
    %887 = vmatpush1.msra.mxu0 0.0
    %888 = vmatprep.mubr.f32.mxu0 0.0
    %v889 = vand.u32 %v543, 4294901760
    %v890 = vsub.f32 %v543, %v889
    %891 = vmatmul.mubr.f32.gmra.mrb[0].mxu0 %v890
    %v892 = vpop.f32.mrb[0].mxu0
    %v893 = vadd.f32 %v789, %v892
    %v894 = vpop.f32.mrb[0].mxu0
    %895 = vdwg.mxu0
    %896 = vmatprep.subr.mxu0 0.0
    %v897 = vand.u32 %v30, 4294901760
    %898 = vmatpush1.msra.mxu0 %v897
    %899 = vmatprep.subr.mxu0 0.0
    %v900 = vand.u32 %v31, 4294901760
    %901 = vmatpush1.msra.mxu0 %v900
    %902 = vmatprep.subr.mxu0 0.0
    %v903 = vand.u32 %v32, 4294901760
    %904 = vmatpush1.msra.mxu0 %v903
    %905 = vmatprep.subr.mxu0 0.0
    %v906 = vand.u32 %v33, 4294901760
    %907 = vmatpush1.msra.mxu0 %v906
    %908 = vmatprep.subr.mxu0 0.0
    %v909 = vand.u32 %v34, 4294901760
    %910 = vmatpush1.msra.mxu0 %v909
    %911 = vmatprep.subr.mxu0 0.0
    %v912 = vand.u32 %v35, 4294901760
    %913 = vmatpush1.msra.mxu0 %v912
    %914 = vmatprep.subr.mxu0 0.0
    %v915 = vand.u32 %v36, 4294901760
    %916 = vmatpush1.msra.mxu0 %v915
    %917 = vmatprep.subr.mxu0 0.0
    %v918 = vand.u32 %v37, 4294901760
    %919 = vmatpush1.msra.mxu0 %v918
    %920 = vmatprep.subr.mxu0 0.0
    %v921 = vand.u32 %v38, 4294901760
    %922 = vmatpush1.msra.mxu0 %v921
    %923 = vmatprep.subr.mxu0 0.0
    %v924 = vand.u32 %v39, 4294901760
    %925 = vmatpush1.msra.mxu0 %v924
    %926 = vmatprep.subr.mxu0 0.0
    %v927 = vand.u32 %v40, 4294901760
    %928 = vmatpush1.msra.mxu0 %v927
    %929 = vmatprep.subr.mxu0 0.0
    %v930 = vand.u32 %v41, 4294901760
    %931 = vmatpush1.msra.mxu0 %v930
    %932 = vmatprep.subr.mxu0 0.0
    %v933 = vand.u32 %v42, 4294901760
    %934 = vmatpush1.msra.mxu0 %v933
    %935 = vmatprep.subr.mxu0 0.0
    %v936 = vand.u32 %v43, 4294901760
    %937 = vmatpush1.msra.mxu0 %v936
    %938 = vmatprep.subr.mxu0 0.0
    %v939 = vand.u32 %v44, 4294901760
    %940 = vmatpush1.msra.mxu0 %v939
    %941 = vmatprep.subr.mxu0 0.0
    %v942 = vand.u32 %v45, 4294901760
    %943 = vmatpush1.msra.mxu0 %v942
    %944 = vmatprep.subr.mxu0 0.0
    %945 = vmatpush1.msra.mxu0 0.0
    %946 = vmatprep.subr.mxu0 0.0
    %947 = vmatpush1.msra.mxu0 0.0
    %948 = vmatprep.subr.mxu0 0.0
    %949 = vmatpush1.msra.mxu0 0.0
    %950 = vmatprep.subr.mxu0 0.0
    %951 = vmatpush1.msra.mxu0 0.0
    %952 = vmatprep.subr.mxu0 0.0
    %953 = vmatpush1.msra.mxu0 0.0
    %954 = vmatprep.subr.mxu0 0.0
    %955 = vmatpush1.msra.mxu0 0.0
    %956 = vmatprep.subr.mxu0 0.0
    %957 = vmatpush1.msra.mxu0 0.0
    %958 = vmatprep.subr.mxu0 0.0
    %959 = vmatpush1.msra.mxu0 0.0
    %960 = vmatprep.subr.mxu0 0.0
    %961 = vmatpush1.msra.mxu0 0.0
    %962 = vmatprep.subr.mxu0 0.0
    %963 = vmatpush1.msra.mxu0 0.0
    %964 = vmatprep.subr.mxu0 0.0
    %965 = vmatpush1.msra.mxu0 0.0
    %966 = vmatprep.subr.mxu0 0.0
    %967 = vmatpush1.msra.mxu0 0.0
    %968 = vmatprep.subr.mxu0 0.0
    %969 = vmatpush1.msra.mxu0 0.0
    %970 = vmatprep.subr.mxu0 0.0
    %971 = vmatpush1.msra.mxu0 0.0
    %972 = vmatprep.subr.mxu0 0.0
    %973 = vmatpush1.msra.mxu0 0.0
    %974 = vmatprep.subr.mxu0 0.0
    %975 = vmatpush1.msra.mxu0 0.0
    %976 = vmatprep.mubr.f32.mxu0 0.0
    %v977 = vand.u32 %v543, 4294901760
    %v978 = vsub.f32 %v543, %v977
    %v979 = vand.u32 %v978, 4294901760
    %980 = vmatmul.mubr.f32.gmra.mrb[0].mxu0 %v979
    %v981 = vpop.f32.mrb[0].mxu0
    %v982 = vadd.f32 %v893, %v981
    %v983 = vpop.f32.mrb[0].mxu0
    %984 = vdwg.mxu0
    %985 = vmatprep.subr.mxu0 0.0
    %v986 = vand.u32 %v30, 4294901760
    %v987 = vsub.f32 %v30, %v986
    %v988 = vand.u32 %v987, 4294901760
    %989 = vmatpush1.msra.mxu0 %v988
    %990 = vmatprep.subr.mxu0 0.0
    %v991 = vand.u32 %v31, 4294901760
    %v992 = vsub.f32 %v31, %v991
    %v993 = vand.u32 %v992, 4294901760
    %994 = vmatpush1.msra.mxu0 %v993
    %995 = vmatprep.subr.mxu0 0.0
    %v996 = vand.u32 %v32, 4294901760
    %v997 = vsub.f32 %v32, %v996
    %v998 = vand.u32 %v997, 4294901760
    %999 = vmatpush1.msra.mxu0 %v998
    %1000 = vmatprep.subr.mxu0 0.0
    %v1001 = vand.u32 %v33, 4294901760
    %v1002 = vsub.f32 %v33, %v1001
    %v1003 = vand.u32 %v1002, 4294901760
    %1004 = vmatpush1.msra.mxu0 %v1003
    %1005 = vmatprep.subr.mxu0 0.0
    %v1006 = vand.u32 %v34, 4294901760
    %v1007 = vsub.f32 %v34, %v1006
    %v1008 = vand.u32 %v1007, 4294901760
    %1009 = vmatpush1.msra.mxu0 %v1008
    %1010 = vmatprep.subr.mxu0 0.0
    %v1011 = vand.u32 %v35, 4294901760
    %v1012 = vsub.f32 %v35, %v1011
    %v1013 = vand.u32 %v1012, 4294901760
    %1014 = vmatpush1.msra.mxu0 %v1013
    %1015 = vmatprep.subr.mxu0 0.0
    %v1016 = vand.u32 %v36, 4294901760
    %v1017 = vsub.f32 %v36, %v1016
    %v1018 = vand.u32 %v1017, 4294901760
    %1019 = vmatpush1.msra.mxu0 %v1018
    %1020 = vmatprep.subr.mxu0 0.0
    %v1021 = vand.u32 %v37, 4294901760
    %v1022 = vsub.f32 %v37, %v1021
    %v1023 = vand.u32 %v1022, 4294901760
    %1024 = vmatpush1.msra.mxu0 %v1023
    %1025 = vmatprep.subr.mxu0 0.0
    %v1026 = vand.u32 %v38, 4294901760
    %v1027 = vsub.f32 %v38, %v1026
    %v1028 = vand.u32 %v1027, 4294901760
    %1029 = vmatpush1.msra.mxu0 %v1028
    %1030 = vmatprep.subr.mxu0 0.0
    %v1031 = vand.u32 %v39, 4294901760
    %v1032 = vsub.f32 %v39, %v1031
    %v1033 = vand.u32 %v1032, 4294901760
    %1034 = vmatpush1.msra.mxu0 %v1033
    %1035 = vmatprep.subr.mxu0 0.0
    %v1036 = vand.u32 %v40, 4294901760
    %v1037 = vsub.f32 %v40, %v1036
    %v1038 = vand.u32 %v1037, 4294901760
    %1039 = vmatpush1.msra.mxu0 %v1038
    %1040 = vmatprep.subr.mxu0 0.0
    %v1041 = vand.u32 %v41, 4294901760
    %v1042 = vsub.f32 %v41, %v1041
    %v1043 = vand.u32 %v1042, 4294901760
    %1044 = vmatpush1.msra.mxu0 %v1043
    %1045 = vmatprep.subr.mxu0 0.0
    %v1046 = vand.u32 %v42, 4294901760
    %v1047 = vsub.f32 %v42, %v1046
    %v1048 = vand.u32 %v1047, 4294901760
    %1049 = vmatpush1.msra.mxu0 %v1048
    %1050 = vmatprep.subr.mxu0 0.0
    %v1051 = vand.u32 %v43, 4294901760
    %v1052 = vsub.f32 %v43, %v1051
    %v1053 = vand.u32 %v1052, 4294901760
    %1054 = vmatpush1.msra.mxu0 %v1053
    %1055 = vmatprep.subr.mxu0 0.0
    %v1056 = vand.u32 %v44, 4294901760
    %v1057 = vsub.f32 %v44, %v1056
    %v1058 = vand.u32 %v1057, 4294901760
    %1059 = vmatpush1.msra.mxu0 %v1058
    %1060 = vmatprep.subr.mxu0 0.0
    %v1061 = vand.u32 %v45, 4294901760
    %v1062 = vsub.f32 %v45, %v1061
    %v1063 = vand.u32 %v1062, 4294901760
    %1064 = vmatpush1.msra.mxu0 %v1063
    %1065 = vmatprep.subr.mxu0 0.0
    %1066 = vmatpush1.msra.mxu0 0.0
    %1067 = vmatprep.subr.mxu0 0.0
    %1068 = vmatpush1.msra.mxu0 0.0
    %1069 = vmatprep.subr.mxu0 0.0
    %1070 = vmatpush1.msra.mxu0 0.0
    %1071 = vmatprep.subr.mxu0 0.0
    %1072 = vmatpush1.msra.mxu0 0.0
    %1073 = vmatprep.subr.mxu0 0.0
    %1074 = vmatpush1.msra.mxu0 0.0
    %1075 = vmatprep.subr.mxu0 0.0
    %1076 = vmatpush1.msra.mxu0 0.0
    %1077 = vmatprep.subr.mxu0 0.0
    %1078 = vmatpush1.msra.mxu0 0.0
    %1079 = vmatprep.subr.mxu0 0.0
    %1080 = vmatpush1.msra.mxu0 0.0
    %1081 = vmatprep.subr.mxu0 0.0
    %1082 = vmatpush1.msra.mxu0 0.0
    %1083 = vmatprep.subr.mxu0 0.0
    %1084 = vmatpush1.msra.mxu0 0.0
    %1085 = vmatprep.subr.mxu0 0.0
    %1086 = vmatpush1.msra.mxu0 0.0
    %1087 = vmatprep.subr.mxu0 0.0
    %1088 = vmatpush1.msra.mxu0 0.0
    %1089 = vmatprep.subr.mxu0 0.0
    %1090 = vmatpush1.msra.mxu0 0.0
    %1091 = vmatprep.subr.mxu0 0.0
    %1092 = vmatpush1.msra.mxu0 0.0
    %1093 = vmatprep.subr.mxu0 0.0
    %1094 = vmatpush1.msra.mxu0 0.0
    %1095 = vmatprep.subr.mxu0 0.0
    %1096 = vmatpush1.msra.mxu0 0.0
    %1097 = vmatprep.mubr.f32.mxu0 0.0
    %v1098 = vand.u32 %v543, 4294901760
    %1099 = vmatmul.mubr.f32.gmra.mrb[0].mxu0 %v1098
    %v1100 = vpop.f32.mrb[0].mxu0
    %v1101 = vadd.f32 %v982, %v1100
    %v1102 = vpop.f32.mrb[0].mxu0
    %1103 = vdwg.mxu0
    %1104 = vmatprep.subr.mxu0 0.0
    %v1105 = vand.u32 %v30, 4294901760
    %1106 = vmatpush1.msra.mxu0 %v1105
    %1107 = vmatprep.subr.mxu0 0.0
    %v1108 = vand.u32 %v31, 4294901760
    %1109 = vmatpush1.msra.mxu0 %v1108
    %1110 = vmatprep.subr.mxu0 0.0
    %v1111 = vand.u32 %v32, 4294901760
    %1112 = vmatpush1.msra.mxu0 %v1111
    %1113 = vmatprep.subr.mxu0 0.0
    %v1114 = vand.u32 %v33, 4294901760
    %1115 = vmatpush1.msra.mxu0 %v1114
    %1116 = vmatprep.subr.mxu0 0.0
    %v1117 = vand.u32 %v34, 4294901760
    %1118 = vmatpush1.msra.mxu0 %v1117
    %1119 = vmatprep.subr.mxu0 0.0
    %v1120 = vand.u32 %v35, 4294901760
    %1121 = vmatpush1.msra.mxu0 %v1120
    %1122 = vmatprep.subr.mxu0 0.0
    %v1123 = vand.u32 %v36, 4294901760
    %1124 = vmatpush1.msra.mxu0 %v1123
    %1125 = vmatprep.subr.mxu0 0.0
    %v1126 = vand.u32 %v37, 4294901760
    %1127 = vmatpush1.msra.mxu0 %v1126
    %1128 = vmatprep.subr.mxu0 0.0
    %v1129 = vand.u32 %v38, 4294901760
    %1130 = vmatpush1.msra.mxu0 %v1129
    %1131 = vmatprep.subr.mxu0 0.0
    %v1132 = vand.u32 %v39, 4294901760
    %1133 = vmatpush1.msra.mxu0 %v1132
    %1134 = vmatprep.subr.mxu0 0.0
    %v1135 = vand.u32 %v40, 4294901760
    %1136 = vmatpush1.msra.mxu0 %v1135
    %1137 = vmatprep.subr.mxu0 0.0
    %v1138 = vand.u32 %v41, 4294901760
    %1139 = vmatpush1.msra.mxu0 %v1138
    %1140 = vmatprep.subr.mxu0 0.0
    %v1141 = vand.u32 %v42, 4294901760
    %1142 = vmatpush1.msra.mxu0 %v1141
    %1143 = vmatprep.subr.mxu0 0.0
    %v1144 = vand.u32 %v43, 4294901760
    %1145 = vmatpush1.msra.mxu0 %v1144
    %1146 = vmatprep.subr.mxu0 0.0
    %v1147 = vand.u32 %v44, 4294901760
    %1148 = vmatpush1.msra.mxu0 %v1147
    %1149 = vmatprep.subr.mxu0 0.0
    %v1150 = vand.u32 %v45, 4294901760
    %1151 = vmatpush1.msra.mxu0 %v1150
    %1152 = vmatprep.subr.mxu0 0.0
    %1153 = vmatpush1.msra.mxu0 0.0
    %1154 = vmatprep.subr.mxu0 0.0
    %1155 = vmatpush1.msra.mxu0 0.0
    %1156 = vmatprep.subr.mxu0 0.0
    %1157 = vmatpush1.msra.mxu0 0.0
    %1158 = vmatprep.subr.mxu0 0.0
    %1159 = vmatpush1.msra.mxu0 0.0
    %1160 = vmatprep.subr.mxu0 0.0
    %1161 = vmatpush1.msra.mxu0 0.0
    %1162 = vmatprep.subr.mxu0 0.0
    %1163 = vmatpush1.msra.mxu0 0.0
    %1164 = vmatprep.subr.mxu0 0.0
    %1165 = vmatpush1.msra.mxu0 0.0
    %1166 = vmatprep.subr.mxu0 0.0
    %1167 = vmatpush1.msra.mxu0 0.0
    %1168 = vmatprep.subr.mxu0 0.0
    %1169 = vmatpush1.msra.mxu0 0.0
    %1170 = vmatprep.subr.mxu0 0.0
    %1171 = vmatpush1.msra.mxu0 0.0
    %1172 = vmatprep.subr.mxu0 0.0
    %1173 = vmatpush1.msra.mxu0 0.0
    %1174 = vmatprep.subr.mxu0 0.0
    %1175 = vmatpush1.msra.mxu0 0.0
    %1176 = vmatprep.subr.mxu0 0.0
    %1177 = vmatpush1.msra.mxu0 0.0
    %1178 = vmatprep.subr.mxu0 0.0
    %1179 = vmatpush1.msra.mxu0 0.0
    %1180 = vmatprep.subr.mxu0 0.0
    %1181 = vmatpush1.msra.mxu0 0.0
    %1182 = vmatprep.subr.mxu0 0.0
    %1183 = vmatpush1.msra.mxu0 0.0
    %1184 = vmatprep.mubr.f32.mxu0 0.0
    %v1185 = vand.u32 %v543, 4294901760
    %1186 = vmatmul.mubr.f32.gmra.mrb[0].mxu0 %v1185
    %v1187 = vpop.f32.mrb[0].mxu0
    %v1188 = vadd.f32 %v1101, %v1187
    %v1189 = vpop.f32.mrb[0].mxu0
    %1190 = vdwg.mxu0
    %v1191 = vtanh.pop %v1188
    %v1192 = vmul.f32 %v1191, 2.0
    %v1193 = vmul.f32 %v1188, 1.442695
    %v1194 = vpow.pop %v1193
    %v1195 = vadd.f32 %v1194, 1.0
    %1197 = vrot.lane.b32.xlu0 %v47, 4
    %v1198 = vpop.permute.xlu0 %1197
    %v1200 = vmul.f32 %v1195, %v1198
    %1202 = vrot.lane.b32.xlu0 %v1200, 124
    %v1203 = vpop.permute.xlu0 %1202
    %v1205 = vadd.f32 %v1192, %v1203
    %vm1206 = vcmask 31744
    %1207 = vst.msk [vmem:[#allocation2] sm:$0xff] %vm1206, %v1205
    %1209 = vrot.lane.b32.xlu0 %v1192, 4
    %v1210 = vpop.permute.xlu0 %1209
    %vm1212 = vcmask 64544
    %1213 = vst.msk [vmem:[#allocation2] sm:$0xff] %vm1212, %v1210
    %1215 = vrot.lane.b32.xlu0 %v1195, 4
    %v1216 = vpop.permute.xlu0 %1215
    %vm1218 = vcmask 97344
    %1219 = vst.msk [vmem:[#allocation2] sm:$0xff] %vm1218, %v1216
    // Predicated region
    $region26: #{tpu_custom_call.1} parent=1 // pred_check
      _
    $region27: #{tpu_custom_call.1} parent=1 // pred_check_branch
      %1221 = sbr.rel (0) target = $region29
    $region28: #{tpu_custom_call.1} parent=1 // pred_region
      %s1223 = ssub.s32 128, 128
      %1224 = vsyncadd [#allocation3], %s1223
      %s1226 = sshll.u32 [#allocation2], 4
      %s1227 = int_to_ptr.vmem [resolvable:$true] %s1226
      %1229 = dma.vmem_to_hbm [thread:$0]  %s1227, 128, %s6, [#allocation3]
    $region29: #{tpu_custom_call.1} parent=1 // pred_fallthru
      _
    // Predicated region
    $region30: #{tpu_custom_call.1} parent=1 // pred_check
      _
    $region31: #{tpu_custom_call.1} parent=1 // pred_check_branch
      %1231 = sbr.rel (0) target = $region33
    $region32: #{tpu_custom_call.1} parent=1 // pred_region
      %1232 = dma.done [#allocation3], 128
    $region33: #{tpu_custom_call.1} parent=1 // pred_fallthru
      _
    %1233 = vsyncpa [#allocation3], 1

</llo_original>
